<compile_context>
chip_gen: v6e
topology: v6e:2x2x1
jax: 0.10.0
libtpu: 0.0.40
codegen_flags: <defaults>
</compile_context>

<pallas_src>
import functools

import jax
import jax.numpy as jnp
from jax import lax
from jax.experimental import pallas as pl
from jax.experimental.pallas import tpu as pltpu

EPS = 1e-5  # PyTorch InstanceNorm1d default eps


def _round_up(n, m):
    return ((n + m - 1) // m) * m


def _token_block_kernel(x_ref, w1_ref, b1_ref, w2_ref, b2_ref, out_ref, *, mxu_bf16):
    x = x_ref[...].astype(jnp.float32)

    # --- Two InstanceNorm1d layers (no affine, biased variance, per-row over L) ---
    for _ in range(2):
        mean = jnp.mean(x, axis=-1, keepdims=True)
        xc = x - mean
        var = jnp.mean(xc * xc, axis=-1, keepdims=True)
        x = xc * lax.rsqrt(var + EPS)

    # x.view(input_dim, -1) is an identity reshape for (input_dim, mlp_dim) input.

    # --- MLP: Linear(mlp_dim, mlp_dim) -> ReLU -> Linear(mlp_dim, mlp_dim*input_dim) ---
    if mxu_bf16:
        xm = x.astype(jnp.bfloat16)
        w1 = w1_ref[...].astype(jnp.bfloat16)
        w2 = w2_ref[...].astype(jnp.bfloat16)
    else:
        xm = x
        w1 = w1_ref[...].astype(jnp.float32)
        w2 = w2_ref[...].astype(jnp.float32)

    h = jnp.dot(xm, w1, preferred_element_type=jnp.float32)
    h = jnp.maximum(h + b1_ref[...].astype(jnp.float32), 0.0)
    if mxu_bf16:
        h = h.astype(jnp.bfloat16)
    out = jnp.dot(h, w2, preferred_element_type=jnp.float32)
    out = out + b2_ref[...].astype(jnp.float32)

    out_ref[...] = out.astype(out_ref.dtype)


def token_block_batched(xb, w1t, b1, w2t, b2, *, out_dtype=None, mxu_bf16=False,
                        vmem_budget_bytes=12 * 1024 * 1024, max_row_tile=4096):
    """Batched TokenBlock forward.

    xb : (B, input_dim, mlp_dim)  — B independent TokenBlock inputs
    w1t: (mlp_dim, mlp_dim)            b1: (1, mlp_dim)
    w2t: (mlp_dim, mlp_dim*input_dim)  b2: (1, mlp_dim*input_dim)
    returns (B, input_dim, mlp_dim*input_dim) in out_dtype (default: xb.dtype)
    """
    B, input_dim, mlp_dim = xb.shape
    out_dim = w2t.shape[1]
    out_dtype = xb.dtype if out_dtype is None else out_dtype

    # Every row is independent: stack all instances along the M (sublane) axis.
    rows = B * input_dim
    x2 = jnp.reshape(xb, (rows, mlp_dim))

    # --- Adaptive row tile from a per-generation-safe VMEM budget -------------
    in_bytes = jnp.dtype(xb.dtype).itemsize
    out_bytes = jnp.dtype(out_dtype).itemsize
    w_bytes = (mlp_dim * mlp_dim + mlp_dim + mlp_dim * out_dim + out_dim) * \
        jnp.dtype(w1t.dtype).itemsize
    per_row = 2 * (mlp_dim * in_bytes + out_dim * out_bytes)  # double-buffered x + out
    tm_cap = max(8, ((vmem_budget_bytes - w_bytes) // per_row) // 8 * 8)
    tm_cap = min(tm_cap, max_row_tile)  # <=4096 keeps f32 output under v5e's 16 MiB default

    rows8 = _round_up(rows, 8)
    steps = max(2, pl.cdiv(rows8, tm_cap))
    steps = _round_up(steps, 2)          # even, >=2 -> balanced 2-TC split on v7x
    tm = _round_up(pl.cdiv(rows8, steps), 8)
    padded = tm * steps

    if padded != rows:
        # Zero rows are harmless: var=0 -> rsqrt(eps), result discarded below.
        x2 = jnp.pad(x2, ((0, padded - rows), (0, 0)))

    kernel = functools.partial(_token_block_kernel, mxu_bf16=mxu_bf16)

    out2 = pl.pallas_call(
        kernel,
        out_shape=jax.ShapeDtypeStruct((padded, out_dim), out_dtype),
        grid_spec=pltpu.PrefetchScalarGridSpec(
            num_scalar_prefetch=0,
            grid=(steps,),
            in_specs=[
                # x tile marches over the row axis.
                pl.BlockSpec((tm, mlp_dim), lambda i: (i, 0)),
                # Weights / biases stay resident in VMEM across the whole grid.
                pl.BlockSpec((mlp_dim, mlp_dim), lambda i: (0, 0)),
                pl.BlockSpec((1, mlp_dim), lambda i: (0, 0)),
                pl.BlockSpec((mlp_dim, out_dim), lambda i: (0, 0)),
                pl.BlockSpec((1, out_dim), lambda i: (0, 0)),
            ],
            out_specs=pl.BlockSpec((tm, out_dim), lambda i: (i, 0)),
        ),
        compiler_params=pltpu.CompilerParams(
            dimension_semantics=("parallel",)),  # shards the grid across 2 TCs on v7x
    )(x2, w1t, b1, w2t, b2)

    return jnp.reshape(out2[:rows], (B, input_dim, out_dim))


def token_block_ref(x, w1t, b1, w2t, b2):
    """Plain-JAX reference mirroring the PyTorch forward (works batched too)."""
    for _ in range(2):
        mean = jnp.mean(x, axis=-1, keepdims=True)
        var = jnp.mean((x - mean) ** 2, axis=-1, keepdims=True)
        x = (x - mean) / jnp.sqrt(var + EPS)
    h = jnp.maximum(x @ w1t + b1, 0.0)
    return h @ w2t + b2


def token_block(x, w1t, b1, w2t, b2):
    """Single-instance forward, matching the PyTorch module signature:
    x: (input_dim, mlp_dim) -> (input_dim, mlp_dim*input_dim).

    Per review: an 8x32 input is pure pallas_call launch overhead, so the
    single-instance path goes through plain JAX (XLA fuses this trivially).
    Use token_block_batched() for the Pallas path."""
    return token_block_ref(x, w1t, b1, w2t, b2)


if __name__ == "__main__":
    input_dim = 8
    mlp_dim = 32
    out_dim = mlp_dim * input_dim
    batch = 32  # many TokenBlock instances fused into one pallas_call

    key = jax.random.PRNGKey(0)
    kx, k1, k2, k3, k4 = jax.random.split(key, 5)

    # Batched inputs: (B, C, L) = (batch, input_dim, mlp_dim)
    xb = jax.random.normal(kx, (batch, input_dim, mlp_dim), dtype=jnp.float32)

    # Deterministic parameter init (uniform, roughly matching nn.Linear fan-in scaling).
    bound1 = 1.0 / jnp.sqrt(mlp_dim)
    w1t = jax.random.uniform(k1, (mlp_dim, mlp_dim), jnp.float32, -bound1, bound1)
    b1 = jax.random.uniform(k2, (1, mlp_dim), jnp.float32, -bound1, bound1)
    w2t = jax.random.uniform(k3, (mlp_dim, out_dim), jnp.float32, -bound1, bound1)
    b2 = jax.random.uniform(k4, (1, out_dim), jnp.float32, -bound1, bound1)

    # Batched Pallas path (f32 output, module-exact numerics).
    out_b = jax.block_until_ready(token_block_batched(xb, w1t, b1, w2t, b2))
    ref_b = token_block_ref(xb, w1t, b1, w2t, b2)
    assert out_b.shape == (batch, input_dim, out_dim)
    assert jnp.allclose(out_b, ref_b, atol=1e-4, rtol=1e-4)

    # Optional reduced-writeback path (review item): bf16 output halves HBM stores.
    out_bf16 = jax.block_until_ready(
        token_block_batched(xb, w1t, b1, w2t, b2, out_dtype=jnp.bfloat16))
    assert out_bf16.shape == (batch, input_dim, out_dim)
    assert out_bf16.dtype == jnp.bfloat16
    assert jnp.allclose(out_bf16.astype(jnp.float32), ref_b, atol=5e-2, rtol=5e-2)

    # Single-instance path (module-exact signature), now plain JAX.
    out_1 = jax.block_until_ready(token_block(xb[0], w1t, b1, w2t, b2))
    assert out_1.shape == (input_dim, out_dim)
    assert jnp.allclose(out_1, token_block_ref(xb[0], w1t, b1, w2t, b2),
                        atol=1e-5, rtol=1e-5)

    print("KERNEL_OK")
</pallas_src>

<mosaic_0001>
module attributes {stable_mosaic.version = 11 : i64} {
  func.func @_token_block_kernel(%arg0: i32, %arg1: memref<128x32xf32, #tpu.memory_space<vmem>>, %arg2: memref<32x32xf32, #tpu.memory_space<vmem>>, %arg3: memref<1x32xf32, #tpu.memory_space<vmem>>, %arg4: memref<32x256xf32, #tpu.memory_space<vmem>>, %arg5: memref<1x256xf32, #tpu.memory_space<vmem>>, %arg6: memref<128x256xf32, #tpu.memory_space<vmem>>) attributes {dimension_semantics = [#tpu.dimension_semantics<parallel>], iteration_bounds = array<i64: 2>, scalar_prefetch = 0 : i64, scratch_operands = 0 : i64, tpu.core_type = #tpu.core_type<tc>, window_params = [{transform_indices = @transform_0, window_bounds = array<i64: 128, 32>}, {pipeline_mode = #tpu.pipeline_mode<synchronous>, transform_indices = @transform_1, window_bounds = array<i64: 32, 32>}, {pipeline_mode = #tpu.pipeline_mode<synchronous>, transform_indices = @transform_2, window_bounds = array<i64: 1, 32>}, {pipeline_mode = #tpu.pipeline_mode<synchronous>, transform_indices = @transform_3, window_bounds = array<i64: 32, 256>}, {pipeline_mode = #tpu.pipeline_mode<synchronous>, transform_indices = @transform_4, window_bounds = array<i64: 1, 256>}, {transform_indices = @transform_5, window_bounds = array<i64: 128, 256>}]} {
    %c0 = arith.constant 0 : index
    %c0_0 = arith.constant 0 : index
    %0 = vector.load %arg1[%c0, %c0_0] : memref<128x32xf32, #tpu.memory_space<vmem>>, vector<128x32xf32>
    %cst = arith.constant dense<0.000000e+00> : vector<128xf32>
    %1 = vector.multi_reduction <add>, %0, %cst [1] : vector<128x32xf32> to vector<128xf32>
    %2 = vector.shape_cast %1 : vector<128xf32> to vector<128x1xf32>
    %cst_1 = arith.constant 3.200000e+01 : f32
    %3 = vector.broadcast %cst_1 : f32 to vector<128x1xf32>
    %4 = arith.divf %2, %3 : vector<128x1xf32>
    %5 = vector.broadcast %4 : vector<128x1xf32> to vector<128x32xf32>
    %6 = arith.subf %0, %5 : vector<128x32xf32>
    %7 = arith.mulf %6, %6 : vector<128x32xf32>
    %cst_2 = arith.constant dense<0.000000e+00> : vector<128xf32>
    %8 = vector.multi_reduction <add>, %7, %cst_2 [1] : vector<128x32xf32> to vector<128xf32>
    %9 = vector.shape_cast %8 : vector<128xf32> to vector<128x1xf32>
    %cst_3 = arith.constant 3.200000e+01 : f32
    %10 = vector.broadcast %cst_3 : f32 to vector<128x1xf32>
    %11 = arith.divf %9, %10 : vector<128x1xf32>
    %cst_4 = arith.constant 9.99999974E-6 : f32
    %12 = vector.broadcast %cst_4 : f32 to vector<128x1xf32>
    %13 = arith.addf %11, %12 : vector<128x1xf32>
    %14 = math.rsqrt %13 : vector<128x1xf32>
    %15 = vector.broadcast %14 : vector<128x1xf32> to vector<128x32xf32>
    %16 = arith.mulf %6, %15 : vector<128x32xf32>
    %cst_5 = arith.constant dense<0.000000e+00> : vector<128xf32>
    %17 = vector.multi_reduction <add>, %16, %cst_5 [1] : vector<128x32xf32> to vector<128xf32>
    %18 = vector.shape_cast %17 : vector<128xf32> to vector<128x1xf32>
    %cst_6 = arith.constant 3.200000e+01 : f32
    %19 = vector.broadcast %cst_6 : f32 to vector<128x1xf32>
    %20 = arith.divf %18, %19 : vector<128x1xf32>
    %21 = vector.broadcast %20 : vector<128x1xf32> to vector<128x32xf32>
    %22 = arith.subf %16, %21 : vector<128x32xf32>
    %23 = arith.mulf %22, %22 : vector<128x32xf32>
    %cst_7 = arith.constant dense<0.000000e+00> : vector<128xf32>
    %24 = vector.multi_reduction <add>, %23, %cst_7 [1] : vector<128x32xf32> to vector<128xf32>
    %25 = vector.shape_cast %24 : vector<128xf32> to vector<128x1xf32>
    %cst_8 = arith.constant 3.200000e+01 : f32
    %26 = vector.broadcast %cst_8 : f32 to vector<128x1xf32>
    %27 = arith.divf %25, %26 : vector<128x1xf32>
    %cst_9 = arith.constant 9.99999974E-6 : f32
    %28 = vector.broadcast %cst_9 : f32 to vector<128x1xf32>
    %29 = arith.addf %27, %28 : vector<128x1xf32>
    %30 = math.rsqrt %29 : vector<128x1xf32>
    %31 = vector.broadcast %30 : vector<128x1xf32> to vector<128x32xf32>
    %32 = arith.mulf %22, %31 : vector<128x32xf32>
    %c0_10 = arith.constant 0 : index
    %c0_11 = arith.constant 0 : index
    %33 = vector.load %arg2[%c0_10, %c0_11] : memref<32x32xf32, #tpu.memory_space<vmem>>, vector<32x32xf32>
    %c0_12 = arith.constant 0 : index
    %c0_13 = arith.constant 0 : index
    %34 = vector.load %arg4[%c0_12, %c0_13] : memref<32x256xf32, #tpu.memory_space<vmem>>, vector<32x256xf32>
    %cst_14 = arith.constant dense<0.000000e+00> : vector<128x32xf32>
    %35 = tpu.matmul %32, %33, %cst_14 {dimension_numbers = #tpu.dot_dimension_numbers<[1], [0], [0], [1], [0, 0, 1, 1], [], []>} : vector<128x32xf32>, vector<32x32xf32>, vector<128x32xf32> -> vector<128x32xf32>
    %c0_15 = arith.constant 0 : index
    %c0_16 = arith.constant 0 : index
    %36 = vector.load %arg3[%c0_15, %c0_16] : memref<1x32xf32, #tpu.memory_space<vmem>>, vector<1x32xf32>
    %37 = vector.broadcast %36 : vector<1x32xf32> to vector<128x32xf32>
    %38 = arith.addf %35, %37 : vector<128x32xf32>
    %cst_17 = arith.constant 0.000000e+00 : f32
    %39 = vector.broadcast %cst_17 : f32 to vector<128x32xf32>
    %40 = arith.maximumf %38, %39 : vector<128x32xf32>
    %cst_18 = arith.constant dense<0.000000e+00> : vector<128x256xf32>
    %41 = tpu.matmul %40, %34, %cst_18 {dimension_numbers = #tpu.dot_dimension_numbers<[1], [0], [0], [1], [0, 0, 1, 1], [], []>} : vector<128x32xf32>, vector<32x256xf32>, vector<128x256xf32> -> vector<128x256xf32>
    %c0_19 = arith.constant 0 : index
    %c0_20 = arith.constant 0 : index
    %42 = vector.load %arg5[%c0_19, %c0_20] : memref<1x256xf32, #tpu.memory_space<vmem>>, vector<1x256xf32>
    %43 = vector.broadcast %42 : vector<1x256xf32> to vector<128x256xf32>
    %44 = arith.addf %41, %43 : vector<128x256xf32>
    %c0_21 = arith.constant 0 : index
    %c0_22 = arith.constant 0 : index
    %45 = vector.load %arg6[%c0_21, %c0_22] : memref<128x256xf32, #tpu.memory_space<vmem>>, vector<128x256xf32>
    tpu.vector_store %arg6[%c0_21, %c0_22], %44 {strides = array<i32>} : memref<128x256xf32, #tpu.memory_space<vmem>>, vector<128x256xf32>,
    return
  }
  func.func @transform_0(%arg0: i32) -> (i32, i32) {
    %c0_i32 = arith.constant 0 : i32
    %c0_i32_0 = arith.constant 0 : i32
    return %arg0, %c0_i32 : i32, i32
  }
  func.func @transform_1(%arg0: i32) -> (i32, i32) {
    %c0_i32 = arith.constant 0 : i32
    %c0_i32_0 = arith.constant 0 : i32
    %c0_i32_1 = arith.constant 0 : i32
    return %c0_i32, %c0_i32_0 : i32, i32
  }
  func.func @transform_2(%arg0: i32) -> (i32, i32) {
    %c0_i32 = arith.constant 0 : i32
    %c0_i32_0 = arith.constant 0 : i32
    %c0_i32_1 = arith.constant 0 : i32
    return %c0_i32, %c0_i32_0 : i32, i32
  }
  func.func @transform_3(%arg0: i32) -> (i32, i32) {
    %c0_i32 = arith.constant 0 : i32
    %c0_i32_0 = arith.constant 0 : i32
    %c0_i32_1 = arith.constant 0 : i32
    return %c0_i32, %c0_i32_0 : i32, i32
  }
  func.func @transform_4(%arg0: i32) -> (i32, i32) {
    %c0_i32 = arith.constant 0 : i32
    %c0_i32_0 = arith.constant 0 : i32
    %c0_i32_1 = arith.constant 0 : i32
    return %c0_i32, %c0_i32_0 : i32, i32
  }
  func.func @transform_5(%arg0: i32) -> (i32, i32) {
    %c0_i32 = arith.constant 0 : i32
    %c0_i32_0 = arith.constant 0 : i32
    return %arg0, %c0_i32 : i32, i32
  }
}

</mosaic_0001>

<llo_original>
// kernel: tpu_custom_call.1
$region0: #{tpu_custom_call.1}
  #allocation0 [shape = 'u32[]', space=smem, size = 0x4, offset = 0x4, fixed_abs, tag = 'smem constant byte address 0x4 - core index']
  #allocation1 [shape = 'u32[144,128]{1,0:T(1,128)}', space=vmem, size = 0x12000, scoped, tag = 'internal scratch']
  %s0 = inlined_call_operand.vmem [shape: f32[256,32], index: 0, kind: input, shape index: {}]
  %s1 = inlined_call_operand.vmem [shape: f32[32,32], index: 1, kind: input, shape index: {}]
  %s2 = inlined_call_operand.vmem [shape: f32[1,32], index: 2, kind: input, shape index: {}]
  %s3 = inlined_call_operand.vmem [shape: f32[32,256], index: 3, kind: input, shape index: {}]
  %s4 = inlined_call_operand.vmem [shape: f32[1,256], index: 4, kind: input, shape index: {}]
  %s5 = inlined_call_operand.hbm [shape: f32[256,256], index: 5, kind: output, shape index: {}]
  %s6 = sld [smem:[#allocation0]]
  $region53: #{tpu_custom_call.1} parent=0
    _
  %s8 = ssub.s32 1, %s6
  %s9 = scalar_select 0, %s8, %s6
  $region1: #{tpu_custom_call.1} parent=0
    #allocation2 [shape = 'u8[262144]{0}', space=vmem, size = 0x40000, scoped, tag = 'output window, operand 0']
    #allocation3 [shape = 's32[2]{0}', space=sflag, size = 0x8, scoped, tag = 'scoped memory for tpu_custom_call.1']
    %10 = vsyncpa [#allocation3], 0
    %s11 = scalar_lea.sflag [#allocation3], 1
    %12 = vsyncpa %s11, 0
    loop: start=0, step=1, limit=4
    $region2: #{tpu_custom_call.1} parent=1 // loop_pre_header
      _
    $region3: #{tpu_custom_call.1} parent=1 // loop_header
      %s14 = sphi 0, %s18
      %p15 = scmp.ge.s32.totalorder %s14, 4
      %s24 = sphi 0, %s26
      %s27 = sphi 0, %s24
      %s28 = sphi 0, %s27
      %s44 = sphi 0, %s28
      %s48 = sphi 0, %s48
      %s50 = sphi 0, %s48
      %s51 = sphi 0, %s50
      %s65 = sphi 0, %s51
      %s69 = sphi 0, %s69
      %s71 = sphi 0, %s69
      %s72 = sphi 0, %s71
      %s86 = sphi 0, %s72
      %s90 = sphi 0, %s90
      %s92 = sphi 0, %s90
      %s93 = sphi 0, %s92
      %s107 = sphi 0, %s93
      %s111 = sphi 0, %s111
      %s113 = sphi 0, %s111
      %s114 = sphi 0, %s113
      %s128 = sphi 0, %s114
      %s134 = sphi 0, %s136
      %s137 = sphi 0, %s134
      %s138 = sphi 0, %s137
      %s154 = sphi 0, %s138
    $region4: #{tpu_custom_call.1} parent=1 // loop_header_branch
      %17 = sbr.rel (%p15) target = $region8
    $region5: #{tpu_custom_call.1} parent=1 // loop_body
      %s19 = ssub.s32 %s14, 1
      %s20 = ssub.s32 %s14, 2
      %s21 = sadd.s32 %s14, 1
      %s22 = ssub.s32 %s14, %s21
      %p23 = scmp.eq.s32.totalorder %s22, 0
      %s25 = sadd.s32 %s24, 1
      %s26 = scalar_select %p23, %s24, %s25
      %p29 = pneg %p23
      %p30 = scmp.eq.s32.totalorder %s14, 1
      %p31 = por %p29, %p30
      %p32 = scmp.ne.s32.totalorder %s24, %s27
      %p33 = scmp.eq.s32.totalorder %s14, 0
      %p34 = por %p32, %p33
      %p35 = scmp.ne.s32.totalorder %s24, %s27
      %p36 = scmp.eq.s32.totalorder %s19, 1
      %p37 = por %p35, %p36
      %p38 = scmp.ne.s32.totalorder %s27, %s28
      %p39 = scmp.eq.s32.totalorder %s19, 0
      %p40 = por %p38, %p39
      %p41 = scmp.ne.s32.totalorder %s27, %s28
      %p42 = scmp.eq.s32.totalorder %s20, 1
      %p43 = por %p41, %p42
      %p45 = scmp.ne.s32.totalorder %s28, %s44
      %p46 = scmp.eq.s32.totalorder %s20, 0
      %p47 = por %p45, %p46
      %s49 = sadd.s32 %s48, 1
      %p52 = scmp.eq.s32.totalorder %s14, 1
      %p53 = scmp.ne.s32.totalorder %s48, %s50
      %p54 = scmp.eq.s32.totalorder %s14, 0
      %p55 = por %p53, %p54
      %p56 = scmp.ne.s32.totalorder %s48, %s50
      %p57 = scmp.eq.s32.totalorder %s19, 1
      %p58 = por %p56, %p57
      %p59 = scmp.ne.s32.totalorder %s50, %s51
      %p60 = scmp.eq.s32.totalorder %s19, 0
      %p61 = por %p59, %p60
      %p62 = scmp.ne.s32.totalorder %s50, %s51
      %p63 = scmp.eq.s32.totalorder %s20, 1
      %p64 = por %p62, %p63
      %p66 = scmp.ne.s32.totalorder %s51, %s65
      %p67 = scmp.eq.s32.totalorder %s20, 0
      %p68 = por %p66, %p67
      %s70 = sadd.s32 %s69, 1
      %p73 = scmp.eq.s32.totalorder %s14, 1
      %p74 = scmp.ne.s32.totalorder %s69, %s71
      %p75 = scmp.eq.s32.totalorder %s14, 0
      %p76 = por %p74, %p75
      %p77 = scmp.ne.s32.totalorder %s69, %s71
      %p78 = scmp.eq.s32.totalorder %s19, 1
      %p79 = por %p77, %p78
      %p80 = scmp.ne.s32.totalorder %s71, %s72
      %p81 = scmp.eq.s32.totalorder %s19, 0
      %p82 = por %p80, %p81
      %p83 = scmp.ne.s32.totalorder %s71, %s72
      %p84 = scmp.eq.s32.totalorder %s20, 1
      %p85 = por %p83, %p84
      %p87 = scmp.ne.s32.totalorder %s72, %s86
      %p88 = scmp.eq.s32.totalorder %s20, 0
      %p89 = por %p87, %p88
      %s91 = sadd.s32 %s90, 1
      %p94 = scmp.eq.s32.totalorder %s14, 1
      %p95 = scmp.ne.s32.totalorder %s90, %s92
      %p96 = scmp.eq.s32.totalorder %s14, 0
      %p97 = por %p95, %p96
      %p98 = scmp.ne.s32.totalorder %s90, %s92
      %p99 = scmp.eq.s32.totalorder %s19, 1
      %p100 = por %p98, %p99
      %p101 = scmp.ne.s32.totalorder %s92, %s93
      %p102 = scmp.eq.s32.totalorder %s19, 0
      %p103 = por %p101, %p102
      %p104 = scmp.ne.s32.totalorder %s92, %s93
      %p105 = scmp.eq.s32.totalorder %s20, 1
      %p106 = por %p104, %p105
      %p108 = scmp.ne.s32.totalorder %s93, %s107
      %p109 = scmp.eq.s32.totalorder %s20, 0
      %p110 = por %p108, %p109
      %s112 = sadd.s32 %s111, 1
      %p115 = scmp.eq.s32.totalorder %s14, 1
      %p116 = scmp.ne.s32.totalorder %s111, %s113
      %p117 = scmp.eq.s32.totalorder %s14, 0
      %p118 = por %p116, %p117
      %p119 = scmp.ne.s32.totalorder %s111, %s113
      %p120 = scmp.eq.s32.totalorder %s19, 1
      %p121 = por %p119, %p120
      %p122 = scmp.ne.s32.totalorder %s113, %s114
      %p123 = scmp.eq.s32.totalorder %s19, 0
      %p124 = por %p122, %p123
      %p125 = scmp.ne.s32.totalorder %s113, %s114
      %p126 = scmp.eq.s32.totalorder %s20, 1
      %p127 = por %p125, %p126
      %p129 = scmp.ne.s32.totalorder %s114, %s128
      %p130 = scmp.eq.s32.totalorder %s20, 0
      %p131 = por %p129, %p130
      %s132 = ssub.s32 %s14, %s21
      %p133 = scmp.eq.s32.totalorder %s132, 0
      %s135 = sadd.s32 %s134, 1
      %s136 = scalar_select %p133, %s134, %s135
      %p139 = pneg %p133
      %p140 = scmp.eq.s32.totalorder %s14, 1
      %p141 = por %p139, %p140
      %p142 = scmp.ne.s32.totalorder %s134, %s137
      %p143 = scmp.eq.s32.totalorder %s14, 0
      %p144 = por %p142, %p143
      %p145 = scmp.ne.s32.totalorder %s134, %s137
      %p146 = scmp.eq.s32.totalorder %s19, 1
      %p147 = por %p145, %p146
      %p148 = scmp.ne.s32.totalorder %s137, %s138
      %p149 = scmp.eq.s32.totalorder %s19, 0
      %p150 = por %p148, %p149
      %p151 = scmp.ne.s32.totalorder %s137, %s138
      %p152 = scmp.eq.s32.totalorder %s20, 1
      %p153 = por %p151, %p152
      %p155 = scmp.ne.s32.totalorder %s138, %s154
      %p156 = scmp.eq.s32.totalorder %s20, 0
      %p157 = por %p155, %p156
      %p158 = scmp.le.s32.totalorder 1, %s14
      %p159 = scmp.lt.s32.totalorder %s14, 3
      %p160 = pnand %p158, %p159
      %p161 = pneg %p160
      // Predicated region
      $region9: #{tpu_custom_call.1} parent=5 // pred_check
        _
      $region10: #{tpu_custom_call.1} parent=5 // pred_check_branch
        %163 = sbr.rel (%p160) target = $region12
      $region11: #{tpu_custom_call.1} parent=5 // pred_region
        %s164 = ssub.s32 %s14, 1
        // Predicated region
        $region13: #{tpu_custom_call.1} parent=11 // pred_check
          %p165 = pneg %p61
        $region14: #{tpu_custom_call.1} parent=11 // pred_check_branch
          %167 = sbr.rel (%p165) target = $region16
        $region15: #{tpu_custom_call.1} parent=11 // pred_region
          _
        $region16: #{tpu_custom_call.1} parent=11 // pred_fallthru
          _
        // Predicated region
        $region17: #{tpu_custom_call.1} parent=11 // pred_check
          %p168 = pneg %p82
        $region18: #{tpu_custom_call.1} parent=11 // pred_check_branch
          %170 = sbr.rel (%p168) target = $region20
        $region19: #{tpu_custom_call.1} parent=11 // pred_region
          _
        $region20: #{tpu_custom_call.1} parent=11 // pred_fallthru
          _
        // Predicated region
        $region21: #{tpu_custom_call.1} parent=11 // pred_check
          %p171 = pneg %p103
        $region22: #{tpu_custom_call.1} parent=11 // pred_check_branch
          %173 = sbr.rel (%p171) target = $region24
        $region23: #{tpu_custom_call.1} parent=11 // pred_region
          _
        $region24: #{tpu_custom_call.1} parent=11 // pred_fallthru
          _
        // Predicated region
        $region25: #{tpu_custom_call.1} parent=11 // pred_check
          %p174 = pneg %p124
        $region26: #{tpu_custom_call.1} parent=11 // pred_check_branch
          %176 = sbr.rel (%p174) target = $region28
        $region27: #{tpu_custom_call.1} parent=11 // pred_region
          _
        $region28: #{tpu_custom_call.1} parent=11 // pred_fallthru
          _
      $region12: #{tpu_custom_call.1} parent=5 // pred_fallthru
        _
      %p177 = scmp.lt.s32.totalorder %s14, 2
      // Predicated region
      $region29: #{tpu_custom_call.1} parent=5 // pred_check
        %p178 = pneg %p177
      $region30: #{tpu_custom_call.1} parent=5 // pred_check_branch
        %180 = sbr.rel (%p178) target = $region32
      $region31: #{tpu_custom_call.1} parent=5 // pred_region
        // Predicated region
        $region33: #{tpu_custom_call.1} parent=31 // pred_check
          %p181 = pneg %p34
        $region34: #{tpu_custom_call.1} parent=31 // pred_check_branch
          %183 = sbr.rel (%p181) target = $region36
        $region35: #{tpu_custom_call.1} parent=31 // pred_region
          %s184 = smul.u32 16, %s14
          %p185 = scmp.lt.s32.totalorder %s184, 31
          %s186 = scalar_select %p185, %s184, 31
          %s187 = smul.addr %s186, 8
          %s188 = scalar_lea.vmem %s0, %s187
          %s189 = smul.u32 16, %s14
        $region36: #{tpu_custom_call.1} parent=31 // pred_fallthru
          _
      $region32: #{tpu_custom_call.1} parent=5 // pred_fallthru
        _
      %p190 = scmp.le.s32.totalorder 1, %s14
      %p191 = scmp.lt.s32.totalorder %s14, 3
      %p192 = pnand %p190, %p191
      %p193 = pneg %p192
      // Predicated region
      $region37: #{tpu_custom_call.1} parent=5 // pred_check
        _
      $region38: #{tpu_custom_call.1} parent=5 // pred_check_branch
        %195 = sbr.rel (%p192) target = $region40
      $region39: #{tpu_custom_call.1} parent=5 // pred_region
        %s196 = ssub.s32 %s14, 1
        %s197 = smul.u32 16, %s19
        %p198 = scmp.lt.s32.totalorder %s197, 31
        %s199 = scalar_select %p198, %s197, 31
        %s200 = smul.addr %s199, 8
        %s201 = scalar_lea.vmem %s0, %s200
        %p202 = pneg %p40
        %p203 = pneg %p37
        %p204 = pneg %p61
        %p205 = pneg %p58
        %p206 = pneg %p82
        %p207 = pneg %p79
        %p208 = pneg %p103
        %p209 = pneg %p100
        %p210 = pneg %p124
        %p211 = pneg %p121
        %p212 = pneg %p150
        %p213 = pneg %p147
        %s214 = sand.u32 %s137, 1
        %s215 = scalar_lea.sflag [#allocation3], %s214
        %s216 = sand.u32 %s137, 1
        %s217 = smul.addr %s216, 256
        %s218 = scalar_lea.vmem [#allocation2], %s217
        %s219 = smul.u32 16, %s19
        %p220 = scmp.lt.s32.totalorder %s219, 31
        %s221 = scalar_select %p220, %s219, 31
        %s222 = smul.addr %s221, 8
        %s223 = scalar_lea.vmem %s0, %s222
        %s224 = smul.u32 16, %s19
        %s225 = smul.u32 16, %s19
        %v226 = vld [vmem:[%s223] sm:$0xff]
        %v227 = vld [vmem:[%s223 + $0x8] sm:$0xff]
        %v228 = vld [vmem:[%s223 + $0x10] sm:$0xff]
        %v229 = vld [vmem:[%s223 + $0x18] sm:$0xff]
        %v230 = vld [vmem:[%s223 + $0x20] sm:$0xff]
        %v231 = vld [vmem:[%s223 + $0x28] sm:$0xff]
        %v232 = vld [vmem:[%s223 + $0x30] sm:$0xff]
        %v233 = vld [vmem:[%s223 + $0x38] sm:$0xff]
        %v234 = vld [vmem:[%s223 + $0x40] sm:$0xff]
        %v235 = vld [vmem:[%s223 + $0x48] sm:$0xff]
        %v236 = vld [vmem:[%s223 + $0x50] sm:$0xff]
        %v237 = vld [vmem:[%s223 + $0x58] sm:$0xff]
        %v238 = vld [vmem:[%s223 + $0x60] sm:$0xff]
        %v239 = vld [vmem:[%s223 + $0x68] sm:$0xff]
        %v240 = vld [vmem:[%s223 + $0x70] sm:$0xff]
        %v241 = vld [vmem:[%s223 + $0x78] sm:$0xff]
        %vm242 = vcmask 261120
        %v243 = vsel %vm242, %v226, 0.0
        %244 = vadd.xlane.f32.xlu0 %v243
        %v245 = vpop.xlane.xlu0 %244
        %v246 = vsel %vm242, %v227, 0.0
        %247 = vadd.xlane.f32.xlu0 %v246
        %v248 = vpop.xlane.xlu0 %247
        %v249 = vsel %vm242, %v228, 0.0
        %250 = vadd.xlane.f32.xlu0 %v249
        %v251 = vpop.xlane.xlu0 %250
        %v252 = vsel %vm242, %v229, 0.0
        %253 = vadd.xlane.f32.xlu0 %v252
        %v254 = vpop.xlane.xlu0 %253
        %v255 = vsel %vm242, %v230, 0.0
        %256 = vadd.xlane.f32.xlu0 %v255
        %v257 = vpop.xlane.xlu0 %256
        %v258 = vsel %vm242, %v231, 0.0
        %259 = vadd.xlane.f32.xlu0 %v258
        %v260 = vpop.xlane.xlu0 %259
        %v261 = vsel %vm242, %v232, 0.0
        %262 = vadd.xlane.f32.xlu0 %v261
        %v263 = vpop.xlane.xlu0 %262
        %v264 = vsel %vm242, %v233, 0.0
        %265 = vadd.xlane.f32.xlu0 %v264
        %v266 = vpop.xlane.xlu0 %265
        %v267 = vsel %vm242, %v234, 0.0
        %268 = vadd.xlane.f32.xlu0 %v267
        %v269 = vpop.xlane.xlu0 %268
        %v270 = vsel %vm242, %v235, 0.0
        %271 = vadd.xlane.f32.xlu0 %v270
        %v272 = vpop.xlane.xlu0 %271
        %v273 = vsel %vm242, %v236, 0.0
        %274 = vadd.xlane.f32.xlu0 %v273
        %v275 = vpop.xlane.xlu0 %274
        %v276 = vsel %vm242, %v237, 0.0
        %277 = vadd.xlane.f32.xlu0 %v276
        %v278 = vpop.xlane.xlu0 %277
        %v279 = vsel %vm242, %v238, 0.0
        %280 = vadd.xlane.f32.xlu0 %v279
        %v281 = vpop.xlane.xlu0 %280
        %v282 = vsel %vm242, %v239, 0.0
        %283 = vadd.xlane.f32.xlu0 %v282
        %v284 = vpop.xlane.xlu0 %283
        %v285 = vsel %vm242, %v240, 0.0
        %286 = vadd.xlane.f32.xlu0 %v285
        %v287 = vpop.xlane.xlu0 %286
        %v288 = vsel %vm242, %v241, 0.0
        %289 = vadd.xlane.f32.xlu0 %v288
        %v290 = vpop.xlane.xlu0 %289
        %v291 = vrcp.pop 32.0
        %v292 = vmul.f32 %v245, %v291
        %v293 = vmul.f32 %v248, %v291
        %v294 = vmul.f32 %v251, %v291
        %v295 = vmul.f32 %v254, %v291
        %v296 = vmul.f32 %v257, %v291
        %v297 = vmul.f32 %v260, %v291
        %v298 = vmul.f32 %v263, %v291
        %v299 = vmul.f32 %v266, %v291
        %v300 = vmul.f32 %v269, %v291
        %v301 = vmul.f32 %v272, %v291
        %v302 = vmul.f32 %v275, %v291
        %v303 = vmul.f32 %v278, %v291
        %v304 = vmul.f32 %v281, %v291
        %v305 = vmul.f32 %v284, %v291
        %v306 = vmul.f32 %v287, %v291
        %v307 = vmul.f32 %v290, %v291
        %v308 = vsub.f32 %v226, %v292
        %v309 = vsub.f32 %v227, %v293
        %v310 = vsub.f32 %v228, %v294
        %v311 = vsub.f32 %v229, %v295
        %v312 = vsub.f32 %v230, %v296
        %v313 = vsub.f32 %v231, %v297
        %v314 = vsub.f32 %v232, %v298
        %v315 = vsub.f32 %v233, %v299
        %v316 = vsub.f32 %v234, %v300
        %v317 = vsub.f32 %v235, %v301
        %v318 = vsub.f32 %v236, %v302
        %v319 = vsub.f32 %v237, %v303
        %v320 = vsub.f32 %v238, %v304
        %v321 = vsub.f32 %v239, %v305
        %v322 = vsub.f32 %v240, %v306
        %v323 = vsub.f32 %v241, %v307
        %v324 = vmul.f32 %v308, %v308
        %v325 = vmul.f32 %v309, %v309
        %v326 = vmul.f32 %v310, %v310
        %v327 = vmul.f32 %v311, %v311
        %v328 = vmul.f32 %v312, %v312
        %v329 = vmul.f32 %v313, %v313
        %v330 = vmul.f32 %v314, %v314
        %v331 = vmul.f32 %v315, %v315
        %v332 = vmul.f32 %v316, %v316
        %v333 = vmul.f32 %v317, %v317
        %v334 = vmul.f32 %v318, %v318
        %v335 = vmul.f32 %v319, %v319
        %v336 = vmul.f32 %v320, %v320
        %v337 = vmul.f32 %v321, %v321
        %v338 = vmul.f32 %v322, %v322
        %v339 = vmul.f32 %v323, %v323
        %v340 = vsel %vm242, %v324, 0.0
        %341 = vadd.xlane.f32.xlu0 %v340
        %v342 = vpop.xlane.xlu0 %341
        %v343 = vsel %vm242, %v325, 0.0
        %344 = vadd.xlane.f32.xlu0 %v343
        %v345 = vpop.xlane.xlu0 %344
        %v346 = vsel %vm242, %v326, 0.0
        %347 = vadd.xlane.f32.xlu0 %v346
        %v348 = vpop.xlane.xlu0 %347
        %v349 = vsel %vm242, %v327, 0.0
        %350 = vadd.xlane.f32.xlu0 %v349
        %v351 = vpop.xlane.xlu0 %350
        %v352 = vsel %vm242, %v328, 0.0
        %353 = vadd.xlane.f32.xlu0 %v352
        %v354 = vpop.xlane.xlu0 %353
        %v355 = vsel %vm242, %v329, 0.0
        %356 = vadd.xlane.f32.xlu0 %v355
        %v357 = vpop.xlane.xlu0 %356
        %v358 = vsel %vm242, %v330, 0.0
        %359 = vadd.xlane.f32.xlu0 %v358
        %v360 = vpop.xlane.xlu0 %359
        %v361 = vsel %vm242, %v331, 0.0
        %362 = vadd.xlane.f32.xlu0 %v361
        %v363 = vpop.xlane.xlu0 %362
        %v364 = vsel %vm242, %v332, 0.0
        %365 = vadd.xlane.f32.xlu0 %v364
        %v366 = vpop.xlane.xlu0 %365
        %v367 = vsel %vm242, %v333, 0.0
        %368 = vadd.xlane.f32.xlu0 %v367
        %v369 = vpop.xlane.xlu0 %368
        %v370 = vsel %vm242, %v334, 0.0
        %371 = vadd.xlane.f32.xlu0 %v370
        %v372 = vpop.xlane.xlu0 %371
        %v373 = vsel %vm242, %v335, 0.0
        %374 = vadd.xlane.f32.xlu0 %v373
        %v375 = vpop.xlane.xlu0 %374
        %v376 = vsel %vm242, %v336, 0.0
        %377 = vadd.xlane.f32.xlu0 %v376
        %v378 = vpop.xlane.xlu0 %377
        %v379 = vsel %vm242, %v337, 0.0
        %380 = vadd.xlane.f32.xlu0 %v379
        %v381 = vpop.xlane.xlu0 %380
        %v382 = vsel %vm242, %v338, 0.0
        %383 = vadd.xlane.f32.xlu0 %v382
        %v384 = vpop.xlane.xlu0 %383
        %v385 = vsel %vm242, %v339, 0.0
        %386 = vadd.xlane.f32.xlu0 %v385
        %v387 = vpop.xlane.xlu0 %386
        %v388 = vmul.f32 %v342, %v291
        %v389 = vmul.f32 %v345, %v291
        %v390 = vmul.f32 %v348, %v291
        %v391 = vmul.f32 %v351, %v291
        %v392 = vmul.f32 %v354, %v291
        %v393 = vmul.f32 %v357, %v291
        %v394 = vmul.f32 %v360, %v291
        %v395 = vmul.f32 %v363, %v291
        %v396 = vmul.f32 %v366, %v291
        %v397 = vmul.f32 %v369, %v291
        %v398 = vmul.f32 %v372, %v291
        %v399 = vmul.f32 %v375, %v291
        %v400 = vmul.f32 %v378, %v291
        %v401 = vmul.f32 %v381, %v291
        %v402 = vmul.f32 %v384, %v291
        %v403 = vmul.f32 %v387, %v291
        %v404 = vadd.f32 %v388, 1e-05
        %v405 = vadd.f32 %v389, 1e-05
        %v406 = vadd.f32 %v390, 1e-05
        %v407 = vadd.f32 %v391, 1e-05
        %v408 = vadd.f32 %v392, 1e-05
        %v409 = vadd.f32 %v393, 1e-05
        %v410 = vadd.f32 %v394, 1e-05
        %v411 = vadd.f32 %v395, 1e-05
        %v412 = vadd.f32 %v396, 1e-05
        %v413 = vadd.f32 %v397, 1e-05
        %v414 = vadd.f32 %v398, 1e-05
        %v415 = vadd.f32 %v399, 1e-05
        %v416 = vadd.f32 %v400, 1e-05
        %v417 = vadd.f32 %v401, 1e-05
        %v418 = vadd.f32 %v402, 1e-05
        %v419 = vadd.f32 %v403, 1e-05
        %v420 = vrsqrt.pop %v404
        %v421 = vrsqrt.pop %v405
        %v422 = vrsqrt.pop %v406
        %v423 = vrsqrt.pop %v407
        %v424 = vrsqrt.pop %v408
        %v425 = vrsqrt.pop %v409
        %v426 = vrsqrt.pop %v410
        %v427 = vrsqrt.pop %v411
        %v428 = vrsqrt.pop %v412
        %v429 = vrsqrt.pop %v413
        %v430 = vrsqrt.pop %v414
        %v431 = vrsqrt.pop %v415
        %v432 = vrsqrt.pop %v416
        %v433 = vrsqrt.pop %v417
        %v434 = vrsqrt.pop %v418
        %v435 = vrsqrt.pop %v419
        %v436 = vmul.f32 %v308, %v420
        %v437 = vmul.f32 %v309, %v421
        %v438 = vmul.f32 %v310, %v422
        %v439 = vmul.f32 %v311, %v423
        %v440 = vmul.f32 %v312, %v424
        %v441 = vmul.f32 %v313, %v425
        %v442 = vmul.f32 %v314, %v426
        %v443 = vmul.f32 %v315, %v427
        %v444 = vmul.f32 %v316, %v428
        %v445 = vmul.f32 %v317, %v429
        %v446 = vmul.f32 %v318, %v430
        %v447 = vmul.f32 %v319, %v431
        %v448 = vmul.f32 %v320, %v432
        %v449 = vmul.f32 %v321, %v433
        %v450 = vmul.f32 %v322, %v434
        %v451 = vmul.f32 %v323, %v435
        %v452 = vsel %vm242, %v436, 0.0
        %453 = vadd.xlane.f32.xlu0 %v452
        %v454 = vpop.xlane.xlu0 %453
        %v455 = vsel %vm242, %v437, 0.0
        %456 = vadd.xlane.f32.xlu0 %v455
        %v457 = vpop.xlane.xlu0 %456
        %v458 = vsel %vm242, %v438, 0.0
        %459 = vadd.xlane.f32.xlu0 %v458
        %v460 = vpop.xlane.xlu0 %459
        %v461 = vsel %vm242, %v439, 0.0
        %462 = vadd.xlane.f32.xlu0 %v461
        %v463 = vpop.xlane.xlu0 %462
        %v464 = vsel %vm242, %v440, 0.0
        %465 = vadd.xlane.f32.xlu0 %v464
        %v466 = vpop.xlane.xlu0 %465
        %v467 = vsel %vm242, %v441, 0.0
        %468 = vadd.xlane.f32.xlu0 %v467
        %v469 = vpop.xlane.xlu0 %468
        %v470 = vsel %vm242, %v442, 0.0
        %471 = vadd.xlane.f32.xlu0 %v470
        %v472 = vpop.xlane.xlu0 %471
        %v473 = vsel %vm242, %v443, 0.0
        %474 = vadd.xlane.f32.xlu0 %v473
        %v475 = vpop.xlane.xlu0 %474
        %v476 = vsel %vm242, %v444, 0.0
        %477 = vadd.xlane.f32.xlu0 %v476
        %v478 = vpop.xlane.xlu0 %477
        %v479 = vsel %vm242, %v445, 0.0
        %480 = vadd.xlane.f32.xlu0 %v479
        %v481 = vpop.xlane.xlu0 %480
        %v482 = vsel %vm242, %v446, 0.0
        %483 = vadd.xlane.f32.xlu0 %v482
        %v484 = vpop.xlane.xlu0 %483
        %v485 = vsel %vm242, %v447, 0.0
        %486 = vadd.xlane.f32.xlu0 %v485
        %v487 = vpop.xlane.xlu0 %486
        %v488 = vsel %vm242, %v448, 0.0
        %489 = vadd.xlane.f32.xlu0 %v488
        %v490 = vpop.xlane.xlu0 %489
        %v491 = vsel %vm242, %v449, 0.0
        %492 = vadd.xlane.f32.xlu0 %v491
        %v493 = vpop.xlane.xlu0 %492
        %v494 = vsel %vm242, %v450, 0.0
        %495 = vadd.xlane.f32.xlu0 %v494
        %v496 = vpop.xlane.xlu0 %495
        %v497 = vsel %vm242, %v451, 0.0
        %498 = vadd.xlane.f32.xlu0 %v497
        %v499 = vpop.xlane.xlu0 %498
        %v500 = vmul.f32 %v454, %v291
        %v501 = vmul.f32 %v457, %v291
        %v502 = vmul.f32 %v460, %v291
        %v503 = vmul.f32 %v463, %v291
        %v504 = vmul.f32 %v466, %v291
        %v505 = vmul.f32 %v469, %v291
        %v506 = vmul.f32 %v472, %v291
        %v507 = vmul.f32 %v475, %v291
        %v508 = vmul.f32 %v478, %v291
        %v509 = vmul.f32 %v481, %v291
        %v510 = vmul.f32 %v484, %v291
        %v511 = vmul.f32 %v487, %v291
        %v512 = vmul.f32 %v490, %v291
        %v513 = vmul.f32 %v493, %v291
        %v514 = vmul.f32 %v496, %v291
        %v515 = vmul.f32 %v499, %v291
        %v516 = vsub.f32 %v436, %v500
        %v517 = vsub.f32 %v437, %v501
        %v518 = vsub.f32 %v438, %v502
        %v519 = vsub.f32 %v439, %v503
        %v520 = vsub.f32 %v440, %v504
        %v521 = vsub.f32 %v441, %v505
        %v522 = vsub.f32 %v442, %v506
        %v523 = vsub.f32 %v443, %v507
        %v524 = vsub.f32 %v444, %v508
        %v525 = vsub.f32 %v445, %v509
        %v526 = vsub.f32 %v446, %v510
        %v527 = vsub.f32 %v447, %v511
        %v528 = vsub.f32 %v448, %v512
        %v529 = vsub.f32 %v449, %v513
        %v530 = vsub.f32 %v450, %v514
        %v531 = vsub.f32 %v451, %v515
        %v532 = vmul.f32 %v516, %v516
        %v533 = vmul.f32 %v517, %v517
        %v534 = vmul.f32 %v518, %v518
        %v535 = vmul.f32 %v519, %v519
        %v536 = vmul.f32 %v520, %v520
        %v537 = vmul.f32 %v521, %v521
        %v538 = vmul.f32 %v522, %v522
        %v539 = vmul.f32 %v523, %v523
        %v540 = vmul.f32 %v524, %v524
        %v541 = vmul.f32 %v525, %v525
        %v542 = vmul.f32 %v526, %v526
        %v543 = vmul.f32 %v527, %v527
        %v544 = vmul.f32 %v528, %v528
        %v545 = vmul.f32 %v529, %v529
        %v546 = vmul.f32 %v530, %v530
        %v547 = vmul.f32 %v531, %v531
        %v548 = vsel %vm242, %v532, 0.0
        %549 = vadd.xlane.f32.xlu0 %v548
        %v550 = vpop.xlane.xlu0 %549
        %v551 = vsel %vm242, %v533, 0.0
        %552 = vadd.xlane.f32.xlu0 %v551
        %v553 = vpop.xlane.xlu0 %552
        %v554 = vsel %vm242, %v534, 0.0
        %555 = vadd.xlane.f32.xlu0 %v554
        %v556 = vpop.xlane.xlu0 %555
        %v557 = vsel %vm242, %v535, 0.0
        %558 = vadd.xlane.f32.xlu0 %v557
        %v559 = vpop.xlane.xlu0 %558
        %v560 = vsel %vm242, %v536, 0.0
        %561 = vadd.xlane.f32.xlu0 %v560
        %v562 = vpop.xlane.xlu0 %561
        %v563 = vsel %vm242, %v537, 0.0
        %564 = vadd.xlane.f32.xlu0 %v563
        %v565 = vpop.xlane.xlu0 %564
        %v566 = vsel %vm242, %v538, 0.0
        %567 = vadd.xlane.f32.xlu0 %v566
        %v568 = vpop.xlane.xlu0 %567
        %v569 = vsel %vm242, %v539, 0.0
        %570 = vadd.xlane.f32.xlu0 %v569
        %v571 = vpop.xlane.xlu0 %570
        %v572 = vsel %vm242, %v540, 0.0
        %573 = vadd.xlane.f32.xlu0 %v572
        %v574 = vpop.xlane.xlu0 %573
        %v575 = vsel %vm242, %v541, 0.0
        %576 = vadd.xlane.f32.xlu0 %v575
        %v577 = vpop.xlane.xlu0 %576
        %v578 = vsel %vm242, %v542, 0.0
        %579 = vadd.xlane.f32.xlu0 %v578
        %v580 = vpop.xlane.xlu0 %579
        %v581 = vsel %vm242, %v543, 0.0
        %582 = vadd.xlane.f32.xlu0 %v581
        %v583 = vpop.xlane.xlu0 %582
        %v584 = vsel %vm242, %v544, 0.0
        %585 = vadd.xlane.f32.xlu0 %v584
        %v586 = vpop.xlane.xlu0 %585
        %v587 = vsel %vm242, %v545, 0.0
        %588 = vadd.xlane.f32.xlu0 %v587
        %v589 = vpop.xlane.xlu0 %588
        %v590 = vsel %vm242, %v546, 0.0
        %591 = vadd.xlane.f32.xlu0 %v590
        %v592 = vpop.xlane.xlu0 %591
        %v593 = vsel %vm242, %v547, 0.0
        %594 = vadd.xlane.f32.xlu0 %v593
        %v595 = vpop.xlane.xlu0 %594
        %v596 = vmul.f32 %v550, %v291
        %v597 = vmul.f32 %v553, %v291
        %v598 = vmul.f32 %v556, %v291
        %v599 = vmul.f32 %v559, %v291
        %v600 = vmul.f32 %v562, %v291
        %v601 = vmul.f32 %v565, %v291
        %v602 = vmul.f32 %v568, %v291
        %v603 = vmul.f32 %v571, %v291
        %v604 = vmul.f32 %v574, %v291
        %v605 = vmul.f32 %v577, %v291
        %v606 = vmul.f32 %v580, %v291
        %v607 = vmul.f32 %v583, %v291
        %v608 = vmul.f32 %v586, %v291
        %v609 = vmul.f32 %v589, %v291
        %v610 = vmul.f32 %v592, %v291
        %v611 = vmul.f32 %v595, %v291
        %v612 = vadd.f32 %v596, 1e-05
        %v613 = vadd.f32 %v597, 1e-05
        %v614 = vadd.f32 %v598, 1e-05
        %v615 = vadd.f32 %v599, 1e-05
        %v616 = vadd.f32 %v600, 1e-05
        %v617 = vadd.f32 %v601, 1e-05
        %v618 = vadd.f32 %v602, 1e-05
        %v619 = vadd.f32 %v603, 1e-05
        %v620 = vadd.f32 %v604, 1e-05
        %v621 = vadd.f32 %v605, 1e-05
        %v622 = vadd.f32 %v606, 1e-05
        %v623 = vadd.f32 %v607, 1e-05
        %v624 = vadd.f32 %v608, 1e-05
        %v625 = vadd.f32 %v609, 1e-05
        %v626 = vadd.f32 %v610, 1e-05
        %v627 = vadd.f32 %v611, 1e-05
        %v628 = vrsqrt.pop %v612
        %v629 = vrsqrt.pop %v613
        %v630 = vrsqrt.pop %v614
        %v631 = vrsqrt.pop %v615
        %v632 = vrsqrt.pop %v616
        %v633 = vrsqrt.pop %v617
        %v634 = vrsqrt.pop %v618
        %v635 = vrsqrt.pop %v619
        %v636 = vrsqrt.pop %v620
        %v637 = vrsqrt.pop %v621
        %v638 = vrsqrt.pop %v622
        %v639 = vrsqrt.pop %v623
        %v640 = vrsqrt.pop %v624
        %v641 = vrsqrt.pop %v625
        %v642 = vrsqrt.pop %v626
        %v643 = vrsqrt.pop %v627
        %v644 = vmul.f32 %v516, %v628
        %v645 = vmul.f32 %v517, %v629
        %v646 = vmul.f32 %v518, %v630
        %v647 = vmul.f32 %v519, %v631
        %v648 = vmul.f32 %v520, %v632
        %v649 = vmul.f32 %v521, %v633
        %v650 = vmul.f32 %v522, %v634
        %v651 = vmul.f32 %v523, %v635
        %v652 = vmul.f32 %v524, %v636
        %v653 = vmul.f32 %v525, %v637
        %v654 = vmul.f32 %v526, %v638
        %v655 = vmul.f32 %v527, %v639
        %v656 = vmul.f32 %v528, %v640
        %v657 = vmul.f32 %v529, %v641
        %v658 = vmul.f32 %v530, %v642
        %v659 = vmul.f32 %v531, %v643
        %v660 = vld [vmem:[%s1] sm:$0xff]
        %v661 = vld [vmem:[%s1 + $0x8] sm:$0xff]
        %v662 = vld [vmem:[%s1 + $0x10] sm:$0xff]
        %v663 = vld [vmem:[%s1 + $0x18] sm:$0xff]
        %v664 = vld [vmem:[%s3] sm:$0xff]
        %v665 = vld [vmem:[%s3 + $0x8] sm:$0xff]
        %v666 = vld [vmem:[%s3 + $0x10] sm:$0xff]
        %v667 = vld [vmem:[%s3 + $0x18] sm:$0xff]
        %v668 = vld [vmem:[%s3 + $0x20] sm:$0xff]
        %v669 = vld [vmem:[%s3 + $0x28] sm:$0xff]
        %v670 = vld [vmem:[%s3 + $0x30] sm:$0xff]
        %v671 = vld [vmem:[%s3 + $0x38] sm:$0xff]
        %v672 = vld [vmem:[%s2] sm:$0x1]
        %v674 = vlaneseq
        %v675 = vshrl.u32 %v674, 7
        %v676 = vsub.s32 0, %v675
        %v677 = vrot.slane %v672, %v676
        %v680 = vsel %vm242, %v644, 0
        %v683 = vsel %vm242, %v645, 0
        %v686 = vsel %vm242, %v646, 0
        %v689 = vsel %vm242, %v647, 0
        %v692 = vsel %vm242, %v648, 0
        %v695 = vsel %vm242, %v649, 0
        %v698 = vsel %vm242, %v650, 0
        %v701 = vsel %vm242, %v651, 0
        %v704 = vsel %vm242, %v652, 0
        %v707 = vsel %vm242, %v653, 0
        %v710 = vsel %vm242, %v654, 0
        %v713 = vsel %vm242, %v655, 0
        %v716 = vsel %vm242, %v656, 0
        %v719 = vsel %vm242, %v657, 0
        %v722 = vsel %vm242, %v658, 0
        %v725 = vsel %vm242, %v659, 0
        %727 = vmatprep.subr.mxu0 0.0
        %728 = vmatpush1.msra.mxu0 0.0
        %729 = vmatprep.subr.mxu0 0.0
        %730 = vmatpush1.msra.mxu0 0.0
        %731 = vmatprep.subr.mxu0 0.0
        %732 = vmatpush1.msra.mxu0 0.0
        %733 = vmatprep.subr.mxu0 0.0
        %734 = vmatpush1.msra.mxu0 0.0
        %735 = vmatprep.subr.mxu0 0.0
        %736 = vmatpush1.msra.mxu0 0.0
        %737 = vmatprep.subr.mxu0 0.0
        %738 = vmatpush1.msra.mxu0 0.0
        %739 = vmatprep.subr.mxu0 0.0
        %740 = vmatpush1.msra.mxu0 0.0
        %741 = vmatprep.subr.mxu0 0.0
        %742 = vmatpush1.msra.mxu0 0.0
        %743 = vmatprep.subr.mxu0 0.0
        %744 = vmatpush1.msra.mxu0 0.0
        %745 = vmatprep.subr.mxu0 0.0
        %746 = vmatpush1.msra.mxu0 0.0
        %747 = vmatprep.subr.mxu0 0.0
        %748 = vmatpush1.msra.mxu0 0.0
        %749 = vmatprep.subr.mxu0 0.0
        %750 = vmatpush1.msra.mxu0 0.0
        %751 = vmatprep.subr.mxu0 0.0
        %752 = vmatpush1.msra.mxu0 %v663
        %753 = vmatprep.subr.mxu0 0.0
        %754 = vmatpush1.msra.mxu0 %v662
        %755 = vmatprep.subr.mxu0 0.0
        %756 = vmatpush1.msra.mxu0 %v661
        %757 = vmatprep.subr.mxu0 0.0
        %758 = vmatpush1.msra.mxu0 %v660
        %759 = vmatprep.subr.mxu0 0.0
        %760 = vmatpush2.msra.mxu0 0.0
        %761 = vmatprep.subr.mxu0 0.0
        %762 = vmatpush2.msra.mxu0 0.0
        %763 = vmatprep.subr.mxu0 0.0
        %764 = vmatpush2.msra.mxu0 0.0
        %765 = vmatprep.subr.mxu0 0.0
        %766 = vmatpush2.msra.mxu0 0.0
        %767 = vmatprep.subr.mxu0 0.0
        %768 = vmatpush2.msra.mxu0 0.0
        %769 = vmatprep.subr.mxu0 0.0
        %770 = vmatpush2.msra.mxu0 0.0
        %771 = vmatprep.subr.mxu0 0.0
        %772 = vmatpush2.msra.mxu0 0.0
        %773 = vmatprep.subr.mxu0 0.0
        %774 = vmatpush2.msra.mxu0 0.0
        %775 = vmatprep.subr.mxu0 0.0
        %776 = vmatpush2.msra.mxu0 0.0
        %777 = vmatprep.subr.mxu0 0.0
        %778 = vmatpush2.msra.mxu0 0.0
        %779 = vmatprep.subr.mxu0 0.0
        %780 = vmatpush2.msra.mxu0 0.0
        %781 = vmatprep.subr.mxu0 0.0
        %782 = vmatpush2.msra.mxu0 0.0
        %783 = vmatprep.subr.mxu0 0.0
        %784 = vmatpush2.msra.mxu0 0.0
        %785 = vmatprep.subr.mxu0 0.0
        %786 = vmatpush2.msra.mxu0 0.0
        %787 = vmatprep.subr.mxu0 0.0
        %788 = vmatpush2.msra.mxu0 0.0
        %789 = vmatprep.subr.mxu0 0.0
        %790 = vmatpush2.msra.mxu0 0.0
        %791 = vmatprep.mubr.f32.mxu0 0.0
        %792 = vmatmul.mubr.f32.gmra.mxu0 %v680
        %v793 = vpop.f32.mrf.mxu0
        %v794 = vadd.f32 %v677, %v793
        %v795 = vpop.f32.mrf.mxu0
        %796 = vmatprep.mubr.f32.mxu0 0.0
        %797 = vmatmul.mubr.f32.gmra.mxu0 %v683
        %v798 = vpop.f32.mrf.mxu0
        %v799 = vadd.f32 %v677, %v798
        %v800 = vpop.f32.mrf.mxu0
        %801 = vmatprep.mubr.f32.mxu0 0.0
        %802 = vmatmul.mubr.f32.gmra.mxu0 %v686
        %v803 = vpop.f32.mrf.mxu0
        %v804 = vadd.f32 %v677, %v803
        %v805 = vpop.f32.mrf.mxu0
        %806 = vmatprep.mubr.f32.mxu0 0.0
        %807 = vmatmul.mubr.f32.gmra.mxu0 %v689
        %v808 = vpop.f32.mrf.mxu0
        %v809 = vadd.f32 %v677, %v808
        %v810 = vpop.f32.mrf.mxu0
        %811 = vmatprep.mubr.f32.mxu0 0.0
        %812 = vmatmul.mubr.f32.gmra.mxu0 %v692
        %v813 = vpop.f32.mrf.mxu0
        %v814 = vadd.f32 %v677, %v813
        %v815 = vpop.f32.mrf.mxu0
        %816 = vmatprep.mubr.f32.mxu0 0.0
        %817 = vmatmul.mubr.f32.gmra.mxu0 %v695
        %v818 = vpop.f32.mrf.mxu0
        %v819 = vadd.f32 %v677, %v818
        %v820 = vpop.f32.mrf.mxu0
        %821 = vmatprep.mubr.f32.mxu0 0.0
        %822 = vmatmul.mubr.f32.gmra.mxu0 %v698
        %v823 = vpop.f32.mrf.mxu0
        %v824 = vadd.f32 %v677, %v823
        %v825 = vpop.f32.mrf.mxu0
        %826 = vmatprep.mubr.f32.mxu0 0.0
        %827 = vmatmul.mubr.f32.gmra.mxu0 %v701
        %v828 = vpop.f32.mrf.mxu0
        %v829 = vadd.f32 %v677, %v828
        %v830 = vpop.f32.mrf.mxu0
        %831 = vmatprep.mubr.f32.mxu0 0.0
        %832 = vmatmul.mubr.f32.gmra.mxu0 %v704
        %v833 = vpop.f32.mrf.mxu0
        %v834 = vadd.f32 %v677, %v833
        %v835 = vpop.f32.mrf.mxu0
        %836 = vmatprep.mubr.f32.mxu0 0.0
        %837 = vmatmul.mubr.f32.gmra.mxu0 %v707
        %v838 = vpop.f32.mrf.mxu0
        %v839 = vadd.f32 %v677, %v838
        %v840 = vpop.f32.mrf.mxu0
        %841 = vmatprep.mubr.f32.mxu0 0.0
        %842 = vmatmul.mubr.f32.gmra.mxu0 %v710
        %v843 = vpop.f32.mrf.mxu0
        %v844 = vadd.f32 %v677, %v843
        %v845 = vpop.f32.mrf.mxu0
        %846 = vmatprep.mubr.f32.mxu0 0.0
        %847 = vmatmul.mubr.f32.gmra.mxu0 %v713
        %v848 = vpop.f32.mrf.mxu0
        %v849 = vadd.f32 %v677, %v848
        %v850 = vpop.f32.mrf.mxu0
        %851 = vmatprep.mubr.f32.mxu0 0.0
        %852 = vmatmul.mubr.f32.gmra.mxu0 %v716
        %v853 = vpop.f32.mrf.mxu0
        %v854 = vadd.f32 %v677, %v853
        %v855 = vpop.f32.mrf.mxu0
        %856 = vmatprep.mubr.f32.mxu0 0.0
        %857 = vmatmul.mubr.f32.gmra.mxu0 %v719
        %v858 = vpop.f32.mrf.mxu0
        %v859 = vadd.f32 %v677, %v858
        %v860 = vpop.f32.mrf.mxu0
        %861 = vmatprep.mubr.f32.mxu0 0.0
        %862 = vmatmul.mubr.f32.gmra.mxu0 %v722
        %v863 = vpop.f32.mrf.mxu0
        %v864 = vadd.f32 %v677, %v863
        %v865 = vpop.f32.mrf.mxu0
        %866 = vmatprep.mubr.f32.mxu0 0.0
        %867 = vmatmul.mubr.f32.gmra.mxu0 %v725
        %v868 = vpop.f32.mrf.mxu0
        %v869 = vadd.f32 %v677, %v868
        %v870 = vpop.f32.mrf.mxu0
        %871 = vdwg.mxu0
        %v872 = vmax.f32 %v794, 0.0
        %v873 = vmax.f32 %v799, 0.0
        %v874 = vmax.f32 %v804, 0.0
        %v875 = vmax.f32 %v809, 0.0
        %v876 = vmax.f32 %v814, 0.0
        %v877 = vmax.f32 %v819, 0.0
        %v878 = vmax.f32 %v824, 0.0
        %v879 = vmax.f32 %v829, 0.0
        %v880 = vmax.f32 %v834, 0.0
        %v881 = vmax.f32 %v839, 0.0
        %v882 = vmax.f32 %v844, 0.0
        %v883 = vmax.f32 %v849, 0.0
        %v884 = vmax.f32 %v854, 0.0
        %v885 = vmax.f32 %v859, 0.0
        %v886 = vmax.f32 %v864, 0.0
        %v887 = vmax.f32 %v869, 0.0
        %v888 = vld [vmem:[%s4] sm:$0x3]
        %v890 = vlaneseq
        %v891 = vshrl.u32 %v890, 7
        %v892 = vsub.s32 0, %v891
        %v893 = vrot.slane %v888, %v892
        %v894 = vlaneseq
        %v895 = vshrl.u32 %v894, 7
        %v896 = vsub.s32 1, %v895
        %v897 = vrot.slane %v888, %v896
        %v901 = vsel %vm242, %v872, 0
        %v904 = vsel %vm242, %v873, 0
        %v907 = vsel %vm242, %v874, 0
        %v910 = vsel %vm242, %v875, 0
        %v913 = vsel %vm242, %v876, 0
        %v916 = vsel %vm242, %v877, 0
        %v919 = vsel %vm242, %v878, 0
        %v922 = vsel %vm242, %v879, 0
        %v925 = vsel %vm242, %v880, 0
        %v928 = vsel %vm242, %v881, 0
        %v931 = vsel %vm242, %v882, 0
        %v934 = vsel %vm242, %v883, 0
        %v937 = vsel %vm242, %v884, 0
        %v940 = vsel %vm242, %v885, 0
        %v943 = vsel %vm242, %v886, 0
        %v946 = vsel %vm242, %v887, 0
        %948 = vmatprep.subr.mxu0 0.0
        %949 = vmatpush1.msra.mxu0 0.0
        %950 = vmatprep.subr.mxu0 0.0
        %951 = vmatpush1.msra.mxu0 0.0
        %952 = vmatprep.subr.mxu0 0.0
        %953 = vmatpush1.msra.mxu0 0.0
        %954 = vmatprep.subr.mxu0 0.0
        %955 = vmatpush1.msra.mxu0 0.0
        %956 = vmatprep.subr.mxu0 0.0
        %957 = vmatpush1.msra.mxu0 0.0
        %958 = vmatprep.subr.mxu0 0.0
        %959 = vmatpush1.msra.mxu0 0.0
        %960 = vmatprep.subr.mxu0 0.0
        %961 = vmatpush1.msra.mxu0 0.0
        %962 = vmatprep.subr.mxu0 0.0
        %963 = vmatpush1.msra.mxu0 0.0
        %964 = vmatprep.subr.mxu0 0.0
        %965 = vmatpush1.msra.mxu0 0.0
        %966 = vmatprep.subr.mxu0 0.0
        %967 = vmatpush1.msra.mxu0 0.0
        %968 = vmatprep.subr.mxu0 0.0
        %969 = vmatpush1.msra.mxu0 0.0
        %970 = vmatprep.subr.mxu0 0.0
        %971 = vmatpush1.msra.mxu0 0.0
        %972 = vmatprep.subr.mxu0 %v671
        %973 = vmatpush1.msra.mxu0 %v670
        %974 = vmatprep.subr.mxu0 %v669
        %975 = vmatpush1.msra.mxu0 %v668
        %976 = vmatprep.subr.mxu0 %v667
        %977 = vmatpush1.msra.mxu0 %v666
        %978 = vmatprep.subr.mxu0 %v665
        %979 = vmatpush1.msra.mxu0 %v664
        %980 = vmatprep.subr.mxu0 0.0
        %981 = vmatpush2.msra.mxu0 0.0
        %982 = vmatprep.subr.mxu0 0.0
        %983 = vmatpush2.msra.mxu0 0.0
        %984 = vmatprep.subr.mxu0 0.0
        %985 = vmatpush2.msra.mxu0 0.0
        %986 = vmatprep.subr.mxu0 0.0
        %987 = vmatpush2.msra.mxu0 0.0
        %988 = vmatprep.subr.mxu0 0.0
        %989 = vmatpush2.msra.mxu0 0.0
        %990 = vmatprep.subr.mxu0 0.0
        %991 = vmatpush2.msra.mxu0 0.0
        %992 = vmatprep.subr.mxu0 0.0
        %993 = vmatpush2.msra.mxu0 0.0
        %994 = vmatprep.subr.mxu0 0.0
        %995 = vmatpush2.msra.mxu0 0.0
        %996 = vmatprep.subr.mxu0 0.0
        %997 = vmatpush2.msra.mxu0 0.0
        %998 = vmatprep.subr.mxu0 0.0
        %999 = vmatpush2.msra.mxu0 0.0
        %1000 = vmatprep.subr.mxu0 0.0
        %1001 = vmatpush2.msra.mxu0 0.0
        %1002 = vmatprep.subr.mxu0 0.0
        %1003 = vmatpush2.msra.mxu0 0.0
        %1004 = vmatprep.subr.mxu0 0.0
        %1005 = vmatpush2.msra.mxu0 0.0
        %1006 = vmatprep.subr.mxu0 0.0
        %1007 = vmatpush2.msra.mxu0 0.0
        %1008 = vmatprep.subr.mxu0 0.0
        %1009 = vmatpush2.msra.mxu0 0.0
        %1010 = vmatprep.subr.mxu0 0.0
        %1011 = vmatpush2.msra.mxu0 0.0
        %1012 = vmatprep.mubr.f32.mxu0 0.0
        %1013 = vmatmul.mubr.f32.gmra.mxu0 %v901
        %v1014 = vpop.f32.mrf.mxu0
        %v1015 = vadd.f32 %v893, %v1014
        %v1016 = vpop.f32.mrf.mxu0
        %v1017 = vadd.f32 %v897, %v1016
        %1018 = vmatprep.mubr.f32.mxu0 0.0
        %1019 = vmatmul.mubr.f32.gmra.mxu0 %v904
        %v1020 = vpop.f32.mrf.mxu0
        %v1021 = vadd.f32 %v893, %v1020
        %v1022 = vpop.f32.mrf.mxu0
        %v1023 = vadd.f32 %v897, %v1022
        %1024 = vmatprep.mubr.f32.mxu0 0.0
        %1025 = vmatmul.mubr.f32.gmra.mxu0 %v907
        %v1026 = vpop.f32.mrf.mxu0
        %v1027 = vadd.f32 %v893, %v1026
        %v1028 = vpop.f32.mrf.mxu0
        %v1029 = vadd.f32 %v897, %v1028
        %1030 = vmatprep.mubr.f32.mxu0 0.0
        %1031 = vmatmul.mubr.f32.gmra.mxu0 %v910
        %v1032 = vpop.f32.mrf.mxu0
        %v1033 = vadd.f32 %v893, %v1032
        %v1034 = vpop.f32.mrf.mxu0
        %v1035 = vadd.f32 %v897, %v1034
        %1036 = vmatprep.mubr.f32.mxu0 0.0
        %1037 = vmatmul.mubr.f32.gmra.mxu0 %v913
        %v1038 = vpop.f32.mrf.mxu0
        %v1039 = vadd.f32 %v893, %v1038
        %v1040 = vpop.f32.mrf.mxu0
        %v1041 = vadd.f32 %v897, %v1040
        %1042 = vmatprep.mubr.f32.mxu0 0.0
        %1043 = vmatmul.mubr.f32.gmra.mxu0 %v916
        %v1044 = vpop.f32.mrf.mxu0
        %v1045 = vadd.f32 %v893, %v1044
        %v1046 = vpop.f32.mrf.mxu0
        %v1047 = vadd.f32 %v897, %v1046
        %1048 = vmatprep.mubr.f32.mxu0 0.0
        %1049 = vmatmul.mubr.f32.gmra.mxu0 %v919
        %v1050 = vpop.f32.mrf.mxu0
        %v1051 = vadd.f32 %v893, %v1050
        %v1052 = vpop.f32.mrf.mxu0
        %v1053 = vadd.f32 %v897, %v1052
        %1054 = vmatprep.mubr.f32.mxu0 0.0
        %1055 = vmatmul.mubr.f32.gmra.mxu0 %v922
        %v1056 = vpop.f32.mrf.mxu0
        %v1057 = vadd.f32 %v893, %v1056
        %v1058 = vpop.f32.mrf.mxu0
        %v1059 = vadd.f32 %v897, %v1058
        %1060 = vmatprep.mubr.f32.mxu0 0.0
        %1061 = vmatmul.mubr.f32.gmra.mxu0 %v925
        %v1062 = vpop.f32.mrf.mxu0
        %v1063 = vadd.f32 %v893, %v1062
        %v1064 = vpop.f32.mrf.mxu0
        %v1065 = vadd.f32 %v897, %v1064
        %1066 = vmatprep.mubr.f32.mxu0 0.0
        %1067 = vmatmul.mubr.f32.gmra.mxu0 %v928
        %v1068 = vpop.f32.mrf.mxu0
        %v1069 = vadd.f32 %v893, %v1068
        %v1070 = vpop.f32.mrf.mxu0
        %v1071 = vadd.f32 %v897, %v1070
        %1072 = vmatprep.mubr.f32.mxu0 0.0
        %1073 = vmatmul.mubr.f32.gmra.mxu0 %v931
        %v1074 = vpop.f32.mrf.mxu0
        %v1075 = vadd.f32 %v893, %v1074
        %v1076 = vpop.f32.mrf.mxu0
        %v1077 = vadd.f32 %v897, %v1076
        %1078 = vmatprep.mubr.f32.mxu0 0.0
        %1079 = vmatmul.mubr.f32.gmra.mxu0 %v934
        %v1080 = vpop.f32.mrf.mxu0
        %v1081 = vadd.f32 %v893, %v1080
        %v1082 = vpop.f32.mrf.mxu0
        %v1083 = vadd.f32 %v897, %v1082
        %1084 = vmatprep.mubr.f32.mxu0 0.0
        %1085 = vmatmul.mubr.f32.gmra.mxu0 %v937
        %v1086 = vpop.f32.mrf.mxu0
        %v1087 = vadd.f32 %v893, %v1086
        %v1088 = vpop.f32.mrf.mxu0
        %v1089 = vadd.f32 %v897, %v1088
        %1090 = vmatprep.mubr.f32.mxu0 0.0
        %1091 = vmatmul.mubr.f32.gmra.mxu0 %v940
        %v1092 = vpop.f32.mrf.mxu0
        %v1093 = vadd.f32 %v893, %v1092
        %v1094 = vpop.f32.mrf.mxu0
        %v1095 = vadd.f32 %v897, %v1094
        %1096 = vmatprep.mubr.f32.mxu0 0.0
        %1097 = vmatmul.mubr.f32.gmra.mxu0 %v943
        %v1098 = vpop.f32.mrf.mxu0
        %v1099 = vadd.f32 %v893, %v1098
        %v1100 = vpop.f32.mrf.mxu0
        %v1101 = vadd.f32 %v897, %v1100
        %1102 = vmatprep.mubr.f32.mxu0 0.0
        %1103 = vmatmul.mubr.f32.gmra.mxu0 %v946
        %v1104 = vpop.f32.mrf.mxu0
        %v1105 = vadd.f32 %v893, %v1104
        %v1106 = vpop.f32.mrf.mxu0
        %v1107 = vadd.f32 %v897, %v1106
        %1108 = vdwg.mxu0
        %1109 = vst [vmem:[%s218] sm:$0xff] %v1015
        %1110 = vst [vmem:[%s218 + $0x8] sm:$0xff] %v1017
        %1111 = vst [vmem:[%s218 + $0x10] sm:$0xff] %v1021
        %1112 = vst [vmem:[%s218 + $0x18] sm:$0xff] %v1023
        %1113 = vst [vmem:[%s218 + $0x20] sm:$0xff] %v1027
        %1114 = vst [vmem:[%s218 + $0x28] sm:$0xff] %v1029
        %1115 = vst [vmem:[%s218 + $0x30] sm:$0xff] %v1033
        %1116 = vst [vmem:[%s218 + $0x38] sm:$0xff] %v1035
        %1117 = vst [vmem:[%s218 + $0x40] sm:$0xff] %v1039
        %1118 = vst [vmem:[%s218 + $0x48] sm:$0xff] %v1041
        %1119 = vst [vmem:[%s218 + $0x50] sm:$0xff] %v1045
        %1120 = vst [vmem:[%s218 + $0x58] sm:$0xff] %v1047
        %1121 = vst [vmem:[%s218 + $0x60] sm:$0xff] %v1051
        %1122 = vst [vmem:[%s218 + $0x68] sm:$0xff] %v1053
        %1123 = vst [vmem:[%s218 + $0x70] sm:$0xff] %v1057
        %1124 = vst [vmem:[%s218 + $0x78] sm:$0xff] %v1059
        %1125 = vst [vmem:[%s218 + $0x80] sm:$0xff] %v1063
        %1126 = vst [vmem:[%s218 + $0x88] sm:$0xff] %v1065
        %1127 = vst [vmem:[%s218 + $0x90] sm:$0xff] %v1069
        %1128 = vst [vmem:[%s218 + $0x98] sm:$0xff] %v1071
        %1129 = vst [vmem:[%s218 + $0xa0] sm:$0xff] %v1075
        %1130 = vst [vmem:[%s218 + $0xa8] sm:$0xff] %v1077
        %1131 = vst [vmem:[%s218 + $0xb0] sm:$0xff] %v1081
        %1132 = vst [vmem:[%s218 + $0xb8] sm:$0xff] %v1083
        %1133 = vst [vmem:[%s218 + $0xc0] sm:$0xff] %v1087
        %1134 = vst [vmem:[%s218 + $0xc8] sm:$0xff] %v1089
        %1135 = vst [vmem:[%s218 + $0xd0] sm:$0xff] %v1093
        %1136 = vst [vmem:[%s218 + $0xd8] sm:$0xff] %v1095
        %1137 = vst [vmem:[%s218 + $0xe0] sm:$0xff] %v1099
        %1138 = vst [vmem:[%s218 + $0xe8] sm:$0xff] %v1101
        %1139 = vst [vmem:[%s218 + $0xf0] sm:$0xff] %v1105
        %1140 = vst [vmem:[%s218 + $0xf8] sm:$0xff] %v1107
        %s1141 = sand.u32 %s137, 1
        %s1142 = scalar_lea.sflag [#allocation3], %s1141
        %s1143 = sand.u32 %s137, 1
        %s1144 = smul.addr %s1143, 256
        %s1145 = scalar_lea.vmem [#allocation2], %s1144
        // Predicated region
        $region41: #{tpu_custom_call.1} parent=39 // pred_check
          %p1146 = pneg %p147
        $region42: #{tpu_custom_call.1} parent=39 // pred_check_branch
          %1148 = sbr.rel (%p1146) target = $region44
        $region43: #{tpu_custom_call.1} parent=39 // pred_region
          %s1149 = smul.u32 16, %s19
          %s1151 = ssub.s32 4096, 4096
          %1152 = vsyncadd %s1142, %s1151
          %s1153 = smul.addr %s1149, 2
          %s1154 = smul.addr %s1153, 128
          %s1155 = scalar_lea.hbm %s5, %s1154
          %s1156 = sshll.u32 %s1145, 4
          %s1157 = int_to_ptr.vmem [resolvable:$true] %s1156
          %1162 = dma.vmem_to_hbm [thread:$0]  %s1157, 4096, %s1155, %s1142, 256, 256, 16
        $region44: #{tpu_custom_call.1} parent=39 // pred_fallthru
          _
      $region40: #{tpu_custom_call.1} parent=5 // pred_fallthru
        _
      %p1163 = scmp.le.s32.totalorder 2, %s14
      // Predicated region
      $region45: #{tpu_custom_call.1} parent=5 // pred_check
        %p1164 = pneg %p1163
      $region46: #{tpu_custom_call.1} parent=5 // pred_check_branch
        %1166 = sbr.rel (%p1164) target = $region48
      $region47: #{tpu_custom_call.1} parent=5 // pred_region
        %s1167 = ssub.s32 %s14, 2
        // Predicated region
        $region49: #{tpu_custom_call.1} parent=47 // pred_check
          %p1168 = pneg %p153
        $region50: #{tpu_custom_call.1} parent=47 // pred_check_branch
          %1170 = sbr.rel (%p1168) target = $region52
        $region51: #{tpu_custom_call.1} parent=47 // pred_region
          %s1171 = sand.u32 %s138, 1
          %s1172 = scalar_lea.sflag [#allocation3], %s1171
          %s1173 = sand.u32 %s138, 1
          %s1174 = smul.addr %s1173, 256
          %s1175 = scalar_lea.vmem [#allocation2], %s1174
          %1176 = dma.done %s1172, 4096
        $region52: #{tpu_custom_call.1} parent=47 // pred_fallthru
          _
      $region48: #{tpu_custom_call.1} parent=5 // pred_fallthru
        _
    $region6: #{tpu_custom_call.1} parent=1 // loop_footer
      %s18 = sadd.s32 1, %s14
    $region7: #{tpu_custom_call.1} parent=1 // loop_footer_branch
      %13 = sbr.rel target = $region3
    $region8: #{tpu_custom_call.1} parent=1 // loop_exit
      _
    %1177 = vsyncpa [#allocation3], 1
    %s1178 = scalar_lea.sflag [#allocation3], 1
    %1179 = vsyncpa %s1178, 1

</llo_original>
